<compile_context>
chip_gen: v6e
topology: v6e:2x2x1
jax: 0.10.0
libtpu: 0.0.40
codegen_flags: <defaults>
</compile_context>

<pallas_src>
import math

import jax
import jax.numpy as jnp
from jax.experimental import pallas as pl
from jax.experimental.pallas import tpu as pltpu


def _make_kernel(tbg, n, dp, p):
    rows = tbg * n

    def kernel(tok_ref, wh_ref, bh_ref, wo_ref, bo_ref, wv_ref, e_ref, out_ref):
        # tok_ref / out_ref: (rows, dp) lane-packed 2-D slabs (p batch elems/row)
        # wh/wo: (dp, dp) bf16 block-diagonal W^T; bh/bo: (1, dp) f32 tiled bias
        # wv: (dp, p) f32 block-diag (w_h * scale); e: (p, dp) f32 block-diag ones
        x = tok_ref[...].astype(jnp.bfloat16)                               # (rows, dp)

        # h = Fh(tokens): bf16 MXU operands, f32 accumulation.
        h = jnp.dot(x, wh_ref[...],
                    preferred_element_type=jnp.float32) + bh_ref[...]       # (rows, dp) f32

        # One score per packed batch element per row (f32 MXU, block-diag w_h).
        s = jnp.dot(h, wv_ref[...], preferred_element_type=jnp.float32)     # (rows, p)

        # Softmax over the sequence axis, independently per packed element.
        # Only the narrow score array is viewed 3-D.
        s3 = s.reshape(tbg, n, p)
        m = jnp.max(s3, axis=1, keepdims=True)                              # (tbg, 1, p)
        ez = jnp.exp(s3 - m)
        denom = jnp.sum(ez, axis=1, keepdims=True)
        alpha = (ez * pl.reciprocal(denom, approx=True)).reshape(rows, p)   # (rows, p)

        # Broadcast alpha back across each d-lane group via a tiny MXU matmul
        # (avoids cross-lane shuffles).
        aw = jnp.dot(alpha, e_ref[...], preferred_element_type=jnp.float32)  # (rows, dp)

        # c = sum_n alpha_n * h_n per packed element.  The (rows,dp)<->(tbg,n,dp)
        # views are layout no-ops when n % 8 == 0 (enforced by the tiling).
        c = jnp.sum((aw * h).reshape(tbg, n, dp), axis=1, keepdims=True)    # (tbg, 1, dp)
        v = (c * h.reshape(tbg, n, dp)).reshape(rows, dp)                   # (rows, dp)

        # transformed_v = Fo(v); f32 residual, lane-dense store.
        tv = jnp.dot(v.astype(jnp.bfloat16), wo_ref[...],
                     preferred_element_type=jnp.float32) + bo_ref[...]      # (rows, dp)
        out_ref[...] = (h + tv).astype(out_ref.dtype)

    return kernel


def _choose_pack(B, d):
    """Largest divisor of B with p*d <= 128 (one vreg lane width)."""
    want = max(1, 128 // d)
    best = 1
    for cand in range(1, min(B, want) + 1):
        if B % cand == 0:
            best = cand
    return best


def _vmem_limit_bytes():
    cap = None
    try:
        cap = getattr(pltpu.get_tpu_info(), "vmem_capacity_bytes", None)
    except Exception:
        cap = None
    if not cap:
        cap = 64 << 20  # conservative fallback (v7x per-TensorCore physical)
    return int(min(96 << 20, (cap * 3) // 4))


def _num_tensorcores():
    try:
        kind = jax.devices()[0].device_kind.lower()
    except Exception:
        return 1
    return 2 if ("v7" in kind or "7x" in kind) else 1


def _choose_tbg(G, N, dp, tok_itemsize, block_budget_bytes, num_cores):
    """Batch-groups per grid step: largest divisor of G whose block fits the
    VMEM budget and keeps block rows 8-aligned.  On multi-core chips the grid
    extent stays a multiple of the core count; on single-core chips the grid
    may collapse to 1 (saves ~0.35 us/step pipeline overhead)."""
    # Per-row VMEM: tokens + output double-buffered at native dtype, plus ~8
    # live f32 row-wide intermediates (h, alpha_wide, weighted-h, v, tv, ...).
    per_row = dp * (4 * tok_itemsize + 8 * 4)
    max_tbg = max(1, int(block_budget_bytes // max(per_row, 1)) // max(N, 1))
    divisors = [c for c in range(1, G + 1) if G % c == 0]

    def valid(c, megacore):
        if c > max_tbg:
            return False
        if c != G and (c * N) % 8 != 0:   # Pallas (8,128) block-row rule
            return False
        if megacore and num_cores > 1 and G >= num_cores:
            return (G // c) % num_cores == 0
        return True

    for megacore in (True, False):
        cands = [c for c in divisors if valid(c, megacore)]
        if cands:
            return max(cands)
    return G


def additive_self_attention(tokens, fh_w, fh_b, fo_w, fo_b, w_h):
    """tokens: (B, N, d). fh_w / fo_w: (d, d) PyTorch layout (out, in).
    fh_b / fo_b / w_h: (d,)."""
    B, N, d = tokens.shape
    scale = 1.0 / math.sqrt(d)

    p = _choose_pack(B, d)
    G = B // p
    dp = p * d

    # One-time host-side layout plumbing: pack p batch elements along the lane
    # axis -> (G*N, p*d) 2-D slab (lane-dense I/O, 128-wide MXU tiles at d=32).
    xp = tokens.reshape(G, p, N, d).transpose(0, 2, 1, 3).reshape(G * N, dp)

    # Block-diagonal weights (same W shared by every packed element); blocks
    # are W^T so a plain x @ W_bd computes x @ W^T per lane group.
    eye = jnp.eye(p, dtype=jnp.float32)
    wh_bd = jnp.kron(eye, jnp.asarray(fh_w, jnp.float32).T).astype(jnp.bfloat16)
    wo_bd = jnp.kron(eye, jnp.asarray(fo_w, jnp.float32).T).astype(jnp.bfloat16)
    bh_t = jnp.tile(jnp.asarray(fh_b, jnp.float32), p).reshape(1, dp)
    bo_t = jnp.tile(jnp.asarray(fo_b, jnp.float32), p).reshape(1, dp)
    wv_bd = jnp.kron(eye, (jnp.asarray(w_h, jnp.float32) * scale).reshape(d, 1))  # (dp, p)
    e_bd = jnp.kron(eye, jnp.ones((1, d), jnp.float32))                           # (p, dp)

    vmem_limit = _vmem_limit_bytes()
    num_cores = _num_tensorcores()
    tok_itemsize = jnp.dtype(tokens.dtype).itemsize
    tbg = _choose_tbg(G, N, dp, tok_itemsize, (vmem_limit * 3) // 4, num_cores)
    rows = tbg * N

    grid_spec = pltpu.PrefetchScalarGridSpec(
        num_scalar_prefetch=0,
        grid=(G // tbg,),
        in_specs=[
            pl.BlockSpec((rows, dp), lambda i: (i, 0)),   # packed tokens (native dtype)
            pl.BlockSpec((dp, dp), lambda i: (0, 0)),     # block-diag Fh^T (bf16)
            pl.BlockSpec((1, dp), lambda i: (0, 0)),      # tiled Fh bias (f32)
            pl.BlockSpec((dp, dp), lambda i: (0, 0)),     # block-diag Fo^T (bf16)
            pl.BlockSpec((1, dp), lambda i: (0, 0)),      # tiled Fo bias (f32)
            pl.BlockSpec((dp, p), lambda i: (0, 0)),      # block-diag scaled w_h
            pl.BlockSpec((p, dp), lambda i: (0, 0)),      # alpha lane-expansion
        ],
        out_specs=pl.BlockSpec((rows, dp), lambda i: (i, 0)),
    )

    cost = pl.CostEstimate(
        flops=int(4 * B * N * d * d + 4 * B * N * d),
        transcendentals=int(B * N),
        bytes_accessed=int(2 * B * N * d * tok_itemsize + 2 * dp * dp * 2 + 4 * dp * 4),
    )

    out_packed = pl.pallas_call(
        _make_kernel(tbg, N, dp, p),
        out_shape=jax.ShapeDtypeStruct((G * N, dp), tokens.dtype),
        grid_spec=grid_spec,
        compiler_params=pltpu.CompilerParams(
            dimension_semantics=("parallel",),
            vmem_limit_bytes=vmem_limit),
        cost_estimate=cost,
        input_output_aliases={0: 0},   # output slab reuses the packed-tokens buffer
    )(xp, wh_bd, bh_t, wo_bd, bo_t, wv_bd, e_bd)

    # Unpack back to (B, N, d).
    return out_packed.reshape(G, N, p, d).transpose(0, 2, 1, 3).reshape(B, N, d)


def _reference(tokens, fh_w, fh_b, fo_w, fo_b, w_h, scale):
    h = tokens @ fh_w.T + fh_b
    scores = h @ w_h * scale                      # (B, N)
    alpha = jax.nn.softmax(scores, axis=1)
    c = jnp.sum(alpha[..., None] * h, axis=1)     # (B, d)
    v = c[:, None, :] * h
    tv = v @ fo_w.T + fo_b
    return h + tv


if __name__ == "__main__":
    B, N, d_model = 8, 8, 32
    key = jax.random.PRNGKey(0)
    k_tok, k_wh, k_fhw, k_fhb, k_fow, k_fob = jax.random.split(key, 6)

    tokens = jax.random.normal(k_tok, (B, N, d_model), dtype=jnp.float32)

    # Deterministic parameter init (shapes match the PyTorch module's __init__).
    w_h = jax.random.normal(k_wh, (d_model,), dtype=jnp.float32)
    lim = 1.0 / math.sqrt(d_model)
    fh_w = jax.random.uniform(k_fhw, (d_model, d_model), minval=-lim, maxval=lim)
    fh_b = jax.random.uniform(k_fhb, (d_model,), minval=-lim, maxval=lim)
    fo_w = jax.random.uniform(k_fow, (d_model, d_model), minval=-lim, maxval=lim)
    fo_b = jax.random.uniform(k_fob, (d_model,), minval=-lim, maxval=lim)

    out = additive_self_attention(tokens, fh_w, fh_b, fo_w, fo_b, w_h)
    out = jax.block_until_ready(out)

    ref = _reference(tokens, fh_w, fh_b, fo_w, fo_b, w_h, 1.0 / math.sqrt(d_model))
    assert out.shape == (B, N, d_model)
    # bf16 MXU operands (f32 accumulation) + approx reciprocal -> loosened tolerance.
    assert jnp.allclose(out, ref, atol=5e-2, rtol=5e-2), "mismatch vs reference"

    print("KERNEL_OK")
</pallas_src>

<mosaic_0001>
module attributes {stable_mosaic.version = 11 : i64} {
  func.func @kernel(%arg0: i32, %arg1: memref<16x128xf32, #tpu.memory_space<vmem>>, %arg2: memref<128x128xbf16, #tpu.memory_space<vmem>>, %arg3: memref<1x128xf32, #tpu.memory_space<vmem>>, %arg4: memref<128x128xbf16, #tpu.memory_space<vmem>>, %arg5: memref<1x128xf32, #tpu.memory_space<vmem>>, %arg6: memref<128x4xf32, #tpu.memory_space<vmem>>, %arg7: memref<4x128xf32, #tpu.memory_space<vmem>>, %arg8: memref<16x128xf32, #tpu.memory_space<vmem>>) attributes {dimension_semantics = [#tpu.dimension_semantics<parallel>], iteration_bounds = array<i64: 1>, scalar_prefetch = 0 : i64, scratch_operands = 0 : i64, tpu.core_type = #tpu.core_type<tc>, window_params = [{transform_indices = @transform_0, window_bounds = array<i64: 16, 128>}, {pipeline_mode = #tpu.pipeline_mode<synchronous>, transform_indices = @transform_1, window_bounds = array<i64: 128, 128>}, {pipeline_mode = #tpu.pipeline_mode<synchronous>, transform_indices = @transform_2, window_bounds = array<i64: 1, 128>}, {pipeline_mode = #tpu.pipeline_mode<synchronous>, transform_indices = @transform_3, window_bounds = array<i64: 128, 128>}, {pipeline_mode = #tpu.pipeline_mode<synchronous>, transform_indices = @transform_4, window_bounds = array<i64: 1, 128>}, {pipeline_mode = #tpu.pipeline_mode<synchronous>, transform_indices = @transform_5, window_bounds = array<i64: 128, 4>}, {pipeline_mode = #tpu.pipeline_mode<synchronous>, transform_indices = @transform_6, window_bounds = array<i64: 4, 128>}, {transform_indices = @transform_7, window_bounds = array<i64: 16, 128>}]} {
    %c0 = arith.constant 0 : index
    %c0_0 = arith.constant 0 : index
    %0 = vector.load %arg1[%c0, %c0_0] : memref<16x128xf32, #tpu.memory_space<vmem>>, vector<16x128xf32>
    %1 = arith.truncf %0 : vector<16x128xf32> to vector<16x128xbf16>
    %c0_1 = arith.constant 0 : index
    %c0_2 = arith.constant 0 : index
    %2 = vector.load %arg2[%c0_1, %c0_2] : memref<128x128xbf16, #tpu.memory_space<vmem>>, vector<128x128xbf16>
    %cst = arith.constant dense<0.000000e+00> : vector<16x128xf32>
    %3 = tpu.matmul %1, %2, %cst {dimension_numbers = #tpu.dot_dimension_numbers<[1], [0], [0], [1], [0, 0, 1, 1], [], []>} : vector<16x128xbf16>, vector<128x128xbf16>, vector<16x128xf32> -> vector<16x128xf32>
    %c0_3 = arith.constant 0 : index
    %c0_4 = arith.constant 0 : index
    %4 = vector.load %arg3[%c0_3, %c0_4] : memref<1x128xf32, #tpu.memory_space<vmem>>, vector<1x128xf32>
    %5 = vector.broadcast %4 : vector<1x128xf32> to vector<16x128xf32>
    %6 = arith.addf %3, %5 : vector<16x128xf32>
    %c0_5 = arith.constant 0 : index
    %c0_6 = arith.constant 0 : index
    %7 = vector.load %arg6[%c0_5, %c0_6] : memref<128x4xf32, #tpu.memory_space<vmem>>, vector<128x4xf32>
    %cst_7 = arith.constant dense<0.000000e+00> : vector<16x4xf32>
    %8 = tpu.matmul %6, %7, %cst_7 {dimension_numbers = #tpu.dot_dimension_numbers<[1], [0], [0], [1], [0, 0, 1, 1], [], []>} : vector<16x128xf32>, vector<128x4xf32>, vector<16x4xf32> -> vector<16x4xf32>
    %9 = vector.shape_cast %8 : vector<16x4xf32> to vector<2x8x4xf32>
    %cst_8 = arith.constant dense<0xFF800000> : vector<2x4xf32>
    %10 = vector.multi_reduction <maximumf>, %9, %cst_8 [1] : vector<2x8x4xf32> to vector<2x4xf32>
    %11 = vector.shape_cast %10 : vector<2x4xf32> to vector<2x1x4xf32>
    %12 = vector.broadcast %11 : vector<2x1x4xf32> to vector<2x8x4xf32>
    %13 = arith.subf %9, %12 : vector<2x8x4xf32>
    %14 = math.exp %13 : vector<2x8x4xf32>
    %cst_9 = arith.constant dense<0.000000e+00> : vector<2x4xf32>
    %15 = vector.multi_reduction <add>, %14, %cst_9 [1] : vector<2x8x4xf32> to vector<2x4xf32>
    %16 = vector.shape_cast %15 : vector<2x4xf32> to vector<2x1x4xf32>
    %17 = tpu.reciprocal %16 {approx = true} : vector<2x1x4xf32> -> vector<2x1x4xf32>
    %18 = vector.broadcast %17 : vector<2x1x4xf32> to vector<2x8x4xf32>
    %19 = arith.mulf %14, %18 : vector<2x8x4xf32>
    %20 = vector.shape_cast %19 : vector<2x8x4xf32> to vector<16x4xf32>
    %c0_10 = arith.constant 0 : index
    %c0_11 = arith.constant 0 : index
    %21 = vector.load %arg7[%c0_10, %c0_11] : memref<4x128xf32, #tpu.memory_space<vmem>>, vector<4x128xf32>
    %cst_12 = arith.constant dense<0.000000e+00> : vector<16x128xf32>
    %22 = tpu.matmul %20, %21, %cst_12 {dimension_numbers = #tpu.dot_dimension_numbers<[1], [0], [0], [1], [0, 0, 1, 1], [], []>} : vector<16x4xf32>, vector<4x128xf32>, vector<16x128xf32> -> vector<16x128xf32>
    %23 = arith.mulf %22, %6 : vector<16x128xf32>
    %24 = vector.shape_cast %23 : vector<16x128xf32> to vector<2x8x128xf32>
    %cst_13 = arith.constant dense<0.000000e+00> : vector<2x128xf32>
    %25 = vector.multi_reduction <add>, %24, %cst_13 [1] : vector<2x8x128xf32> to vector<2x128xf32>
    %26 = vector.shape_cast %25 : vector<2x128xf32> to vector<2x1x128xf32>
    %27 = vector.shape_cast %6 : vector<16x128xf32> to vector<2x8x128xf32>
    %28 = vector.broadcast %26 : vector<2x1x128xf32> to vector<2x8x128xf32>
    %29 = arith.mulf %28, %27 : vector<2x8x128xf32>
    %30 = vector.shape_cast %29 : vector<2x8x128xf32> to vector<16x128xf32>
    %31 = arith.truncf %30 : vector<16x128xf32> to vector<16x128xbf16>
    %c0_14 = arith.constant 0 : index
    %c0_15 = arith.constant 0 : index
    %32 = vector.load %arg4[%c0_14, %c0_15] : memref<128x128xbf16, #tpu.memory_space<vmem>>, vector<128x128xbf16>
    %cst_16 = arith.constant dense<0.000000e+00> : vector<16x128xf32>
    %33 = tpu.matmul %31, %32, %cst_16 {dimension_numbers = #tpu.dot_dimension_numbers<[1], [0], [0], [1], [0, 0, 1, 1], [], []>} : vector<16x128xbf16>, vector<128x128xbf16>, vector<16x128xf32> -> vector<16x128xf32>
    %c0_17 = arith.constant 0 : index
    %c0_18 = arith.constant 0 : index
    %34 = vector.load %arg5[%c0_17, %c0_18] : memref<1x128xf32, #tpu.memory_space<vmem>>, vector<1x128xf32>
    %35 = vector.broadcast %34 : vector<1x128xf32> to vector<16x128xf32>
    %36 = arith.addf %33, %35 : vector<16x128xf32>
    %37 = arith.addf %6, %36 : vector<16x128xf32>
    %c0_19 = arith.constant 0 : index
    %c0_20 = arith.constant 0 : index
    %38 = vector.load %arg8[%c0_19, %c0_20] : memref<16x128xf32, #tpu.memory_space<vmem>>, vector<16x128xf32>
    tpu.vector_store %arg8[%c0_19, %c0_20], %37 {strides = array<i32>} : memref<16x128xf32, #tpu.memory_space<vmem>>, vector<16x128xf32>,
    return
  }
  func.func @transform_0(%arg0: i32) -> (i32, i32) {
    %c0_i32 = arith.constant 0 : i32
    %c0_i32_0 = arith.constant 0 : i32
    return %arg0, %c0_i32 : i32, i32
  }
  func.func @transform_1(%arg0: i32) -> (i32, i32) {
    %c0_i32 = arith.constant 0 : i32
    %c0_i32_0 = arith.constant 0 : i32
    %c0_i32_1 = arith.constant 0 : i32
    return %c0_i32, %c0_i32_0 : i32, i32
  }
  func.func @transform_2(%arg0: i32) -> (i32, i32) {
    %c0_i32 = arith.constant 0 : i32
    %c0_i32_0 = arith.constant 0 : i32
    %c0_i32_1 = arith.constant 0 : i32
    return %c0_i32, %c0_i32_0 : i32, i32
  }
  func.func @transform_3(%arg0: i32) -> (i32, i32) {
    %c0_i32 = arith.constant 0 : i32
    %c0_i32_0 = arith.constant 0 : i32
    %c0_i32_1 = arith.constant 0 : i32
    return %c0_i32, %c0_i32_0 : i32, i32
  }
  func.func @transform_4(%arg0: i32) -> (i32, i32) {
    %c0_i32 = arith.constant 0 : i32
    %c0_i32_0 = arith.constant 0 : i32
    %c0_i32_1 = arith.constant 0 : i32
    return %c0_i32, %c0_i32_0 : i32, i32
  }
  func.func @transform_5(%arg0: i32) -> (i32, i32) {
    %c0_i32 = arith.constant 0 : i32
    %c0_i32_0 = arith.constant 0 : i32
    %c0_i32_1 = arith.constant 0 : i32
    return %c0_i32, %c0_i32_0 : i32, i32
  }
  func.func @transform_6(%arg0: i32) -> (i32, i32) {
    %c0_i32 = arith.constant 0 : i32
    %c0_i32_0 = arith.constant 0 : i32
    %c0_i32_1 = arith.constant 0 : i32
    return %c0_i32, %c0_i32_0 : i32, i32
  }
  func.func @transform_7(%arg0: i32) -> (i32, i32) {
    %c0_i32 = arith.constant 0 : i32
    %c0_i32_0 = arith.constant 0 : i32
    return %arg0, %c0_i32 : i32, i32
  }
}

</mosaic_0001>

<llo_original>
// kernel: tpu_custom_call.1
$region0: #{tpu_custom_call.1}
  #allocation0 [shape = 'u32[]', space=smem, size = 0x4, offset = 0x4, fixed_abs, tag = 'smem constant byte address 0x4 - core index']
  #allocation1 [shape = 'u32[144,128]{1,0:T(1,128)}', space=vmem, size = 0x12000, scoped, tag = 'internal scratch']
  %s0 = inlined_call_operand.hbm [shape: f32[16,128], index: 0, kind: input, shape index: {}, may-alias: {0,7}]
  %s1 = inlined_call_operand.vmem [shape: bf16[128,128], index: 1, kind: input, shape index: {}]
  %s2 = inlined_call_operand.vmem [shape: f32[1,128], index: 2, kind: input, shape index: {}]
  %s3 = inlined_call_operand.vmem [shape: bf16[128,128], index: 3, kind: input, shape index: {}]
  %s4 = inlined_call_operand.vmem [shape: f32[1,128], index: 4, kind: input, shape index: {}]
  %s5 = inlined_call_operand.vmem [shape: f32[128,4], index: 5, kind: input, shape index: {}]
  %s6 = inlined_call_operand.vmem [shape: f32[4,128], index: 6, kind: input, shape index: {}]
  %s7 = inlined_call_operand.hbm [shape: f32[16,128], index: 7, kind: output, shape index: {}, may-alias: {0,7}]
  %s8 = sld [smem:[#allocation0]]
  $region42: #{tpu_custom_call.1} parent=0
    _
  %s10 = ssub.s32 1, %s8
  %s11 = scalar_select 0, %s10, %s8
  $region1: #{tpu_custom_call.1} parent=0
    #allocation2 [shape = 'u8[8192]{0}', space=vmem, size = 0x2000, scoped, tag = 'input window, operand 0, single buffered']
    #allocation3 [shape = 's32[1]{0}', space=sflag, size = 0x4, scoped, tag = 'scoped memory for tpu_custom_call.1']
    #allocation4 [shape = 's32[1]{0}', space=sflag, size = 0x4, scoped, tag = 'scoped memory for tpu_custom_call.1']
    #allocation5 [shape = 'u8[8192]{0}', space=vmem, size = 0x2000, scoped, tag = 'output window, operand 0, single buffered']
    %12 = vsyncpa [#allocation3], 0
    %13 = vsyncpa [#allocation4], 0
    // Predicated region
    $region2: #{tpu_custom_call.1} parent=1 // pred_check
      _
    $region3: #{tpu_custom_call.1} parent=1 // pred_check_branch
      %15 = sbr.rel (0) target = $region5
    $region4: #{tpu_custom_call.1} parent=1 // pred_region
      %s17 = ssub.s32 256, 256
      %18 = vsyncadd [#allocation3], %s17
      %s19 = sshll.u32 [#allocation2], 4
      %s20 = int_to_ptr.vmem [resolvable:$true] %s19
      %25 = dma.hbm_to_vmem [thread:$0]  %s0, 256, %s20, [#allocation3], 128, 128, 8
    $region5: #{tpu_custom_call.1} parent=1 // pred_fallthru
      _
    // Predicated region
    $region6: #{tpu_custom_call.1} parent=1 // pred_check
      _
    $region7: #{tpu_custom_call.1} parent=1 // pred_check_branch
      %27 = sbr.rel (0) target = $region9
    $region8: #{tpu_custom_call.1} parent=1 // pred_region
      _
    $region9: #{tpu_custom_call.1} parent=1 // pred_fallthru
      _
    // Predicated region
    $region10: #{tpu_custom_call.1} parent=1 // pred_check
      _
    $region11: #{tpu_custom_call.1} parent=1 // pred_check_branch
      %29 = sbr.rel (0) target = $region13
    $region12: #{tpu_custom_call.1} parent=1 // pred_region
      _
    $region13: #{tpu_custom_call.1} parent=1 // pred_fallthru
      _
    // Predicated region
    $region14: #{tpu_custom_call.1} parent=1 // pred_check
      _
    $region15: #{tpu_custom_call.1} parent=1 // pred_check_branch
      %31 = sbr.rel (0) target = $region17
    $region16: #{tpu_custom_call.1} parent=1 // pred_region
      _
    $region17: #{tpu_custom_call.1} parent=1 // pred_fallthru
      _
    // Predicated region
    $region18: #{tpu_custom_call.1} parent=1 // pred_check
      _
    $region19: #{tpu_custom_call.1} parent=1 // pred_check_branch
      %33 = sbr.rel (0) target = $region21
    $region20: #{tpu_custom_call.1} parent=1 // pred_region
      _
    $region21: #{tpu_custom_call.1} parent=1 // pred_fallthru
      _
    // Predicated region
    $region22: #{tpu_custom_call.1} parent=1 // pred_check
      _
    $region23: #{tpu_custom_call.1} parent=1 // pred_check_branch
      %35 = sbr.rel (0) target = $region25
    $region24: #{tpu_custom_call.1} parent=1 // pred_region
      _
    $region25: #{tpu_custom_call.1} parent=1 // pred_fallthru
      _
    // Predicated region
    $region26: #{tpu_custom_call.1} parent=1 // pred_check
      _
    $region27: #{tpu_custom_call.1} parent=1 // pred_check_branch
      %37 = sbr.rel (0) target = $region29
    $region28: #{tpu_custom_call.1} parent=1 // pred_region
      _
    $region29: #{tpu_custom_call.1} parent=1 // pred_fallthru
      _
    // Predicated region
    $region30: #{tpu_custom_call.1} parent=1 // pred_check
      _
    $region31: #{tpu_custom_call.1} parent=1 // pred_check_branch
      %39 = sbr.rel (0) target = $region33
    $region32: #{tpu_custom_call.1} parent=1 // pred_region
      %40 = dma.done [#allocation3], 256
    $region33: #{tpu_custom_call.1} parent=1 // pred_fallthru
      _
    %v42 = vld [vmem:[#allocation2] sm:$0xff]
    %v43 = vld [vmem:[#allocation2 + $0x8] sm:$0xff]
    %v44 = vpack.c.bf16 %v43, %v42
    %v45 = vld [vmem:[%s1] sm:$0xf]
    %v46 = vld [vmem:[%s1 + $0x4] sm:$0xf]
    %v47 = vld [vmem:[%s1 + $0x8] sm:$0xf]
    %v48 = vld [vmem:[%s1 + $0xc] sm:$0xf]
    %v49 = vld [vmem:[%s1 + $0x10] sm:$0xf]
    %v50 = vld [vmem:[%s1 + $0x14] sm:$0xf]
    %v51 = vld [vmem:[%s1 + $0x18] sm:$0xf]
    %v52 = vld [vmem:[%s1 + $0x1c] sm:$0xf]
    %v53 = vld [vmem:[%s1 + $0x20] sm:$0xf]
    %v54 = vld [vmem:[%s1 + $0x24] sm:$0xf]
    %v55 = vld [vmem:[%s1 + $0x28] sm:$0xf]
    %v56 = vld [vmem:[%s1 + $0x2c] sm:$0xf]
    %v57 = vld [vmem:[%s1 + $0x30] sm:$0xf]
    %v58 = vld [vmem:[%s1 + $0x34] sm:$0xf]
    %v59 = vld [vmem:[%s1 + $0x38] sm:$0xf]
    %v60 = vld [vmem:[%s1 + $0x3c] sm:$0xf]
    %v61 = vld [vmem:[%s2] sm:$0x1]
    %v63 = vlaneseq
    %v64 = vshrl.u32 %v63, 7
    %v65 = vsub.s32 0, %v64
    %v66 = vrot.slane %v61, %v65
    %v84 = vunpack.c.l.b16 %v45
    %v85 = vunpack.c.l.b16 %v46
    %v86 = vunpack.c.l.b16 %v47
    %v87 = vunpack.c.l.b16 %v48
    %v88 = vunpack.c.l.b16 %v49
    %v89 = vunpack.c.l.b16 %v50
    %v90 = vunpack.c.l.b16 %v51
    %v91 = vunpack.c.l.b16 %v52
    %v92 = vunpack.c.l.b16 %v53
    %v93 = vunpack.c.l.b16 %v54
    %v94 = vunpack.c.l.b16 %v55
    %v95 = vunpack.c.l.b16 %v56
    %v96 = vunpack.c.l.b16 %v57
    %v97 = vunpack.c.l.b16 %v58
    %v98 = vunpack.c.l.b16 %v59
    %v99 = vunpack.c.l.b16 %v60
    %v100 = vpack.c.b16 %v85, %v84
    %v101 = vpack.c.b16 %v87, %v86
    %v102 = vpack.c.b16 %v89, %v88
    %v103 = vpack.c.b16 %v91, %v90
    %v104 = vpack.c.b16 %v93, %v92
    %v105 = vpack.c.b16 %v95, %v94
    %v106 = vpack.c.b16 %v97, %v96
    %v107 = vpack.c.b16 %v99, %v98
    %116 = vmatprep.subr.bf16.mxu0 0
    %117 = vmatpush1.bf16.msra.mxu0 %v107
    %118 = vmatprep.subr.bf16.mxu0 0
    %119 = vmatpush1.bf16.msra.mxu0 %v106
    %120 = vmatprep.subr.bf16.mxu0 0
    %121 = vmatpush1.bf16.msra.mxu0 %v105
    %122 = vmatprep.subr.bf16.mxu0 0
    %123 = vmatpush1.bf16.msra.mxu0 %v104
    %124 = vmatprep.subr.bf16.mxu0 0
    %125 = vmatpush1.bf16.msra.mxu0 %v103
    %126 = vmatprep.subr.bf16.mxu0 0
    %127 = vmatpush1.bf16.msra.mxu0 %v102
    %128 = vmatprep.subr.bf16.mxu0 0
    %129 = vmatpush1.bf16.msra.mxu0 %v101
    %130 = vmatprep.subr.bf16.mxu0 0
    %131 = vmatpush1.bf16.msra.mxu0 %v100
    %132 = vmatprep.subr.bf16.mxu0 0
    %133 = vmatpush2.bf16.msra.mxu0 0
    %134 = vmatprep.subr.bf16.mxu0 0
    %135 = vmatpush2.bf16.msra.mxu0 0
    %136 = vmatprep.subr.bf16.mxu0 0
    %137 = vmatpush2.bf16.msra.mxu0 0
    %138 = vmatprep.subr.bf16.mxu0 0
    %139 = vmatpush2.bf16.msra.mxu0 0
    %140 = vmatprep.subr.bf16.mxu0 0
    %141 = vmatpush2.bf16.msra.mxu0 0
    %142 = vmatprep.subr.bf16.mxu0 0
    %143 = vmatpush2.bf16.msra.mxu0 0
    %144 = vmatprep.subr.bf16.mxu0 0
    %145 = vmatpush2.bf16.msra.mxu0 0
    %146 = vmatprep.subr.bf16.mxu0 0
    %147 = vmatpush2.bf16.msra.mxu0 0
    %148 = vmatprep.mubr.bf16.mxu0 0
    %149 = vmatmul.mubr.bf16.gmra.mxu0 %v44
    %v150 = vpop.f32.mrf.mxu0
    %v151 = vadd.f32 %v66, %v150
    %v152 = vpop.f32.mrf.mxu0
    %v153 = vpop.f32.mrf.mxu0
    %v154 = vadd.f32 %v66, %v153
    %v155 = vpop.f32.mrf.mxu0
    %156 = vdwg.mxu0
    %v157 = vld [vmem:[%s5] sm:$0xff]
    %v158 = vld [vmem:[%s5 + $0x8] sm:$0xff]
    %v159 = vld [vmem:[%s5 + $0x10] sm:$0xff]
    %v160 = vld [vmem:[%s5 + $0x18] sm:$0xff]
    %v161 = vld [vmem:[%s5 + $0x20] sm:$0xff]
    %v162 = vld [vmem:[%s5 + $0x28] sm:$0xff]
    %v163 = vld [vmem:[%s5 + $0x30] sm:$0xff]
    %v164 = vld [vmem:[%s5 + $0x38] sm:$0xff]
    %v165 = vld [vmem:[%s5 + $0x40] sm:$0xff]
    %v166 = vld [vmem:[%s5 + $0x48] sm:$0xff]
    %v167 = vld [vmem:[%s5 + $0x50] sm:$0xff]
    %v168 = vld [vmem:[%s5 + $0x58] sm:$0xff]
    %v169 = vld [vmem:[%s5 + $0x60] sm:$0xff]
    %v170 = vld [vmem:[%s5 + $0x68] sm:$0xff]
    %v171 = vld [vmem:[%s5 + $0x70] sm:$0xff]
    %v172 = vld [vmem:[%s5 + $0x78] sm:$0xff]
    %173 = vmatprep.subr.mxu0 0.0
    %174 = vmatpush1.msra.mxu0 %v172
    %175 = vmatprep.subr.mxu0 0.0
    %176 = vmatpush1.msra.mxu0 %v171
    %177 = vmatprep.subr.mxu0 0.0
    %178 = vmatpush1.msra.mxu0 %v170
    %179 = vmatprep.subr.mxu0 0.0
    %180 = vmatpush1.msra.mxu0 %v169
    %181 = vmatprep.subr.mxu0 0.0
    %182 = vmatpush1.msra.mxu0 %v168
    %183 = vmatprep.subr.mxu0 0.0
    %184 = vmatpush1.msra.mxu0 %v167
    %185 = vmatprep.subr.mxu0 0.0
    %186 = vmatpush1.msra.mxu0 %v166
    %187 = vmatprep.subr.mxu0 0.0
    %188 = vmatpush1.msra.mxu0 %v165
    %189 = vmatprep.subr.mxu0 0.0
    %190 = vmatpush1.msra.mxu0 %v164
    %191 = vmatprep.subr.mxu0 0.0
    %192 = vmatpush1.msra.mxu0 %v163
    %193 = vmatprep.subr.mxu0 0.0
    %194 = vmatpush1.msra.mxu0 %v162
    %195 = vmatprep.subr.mxu0 0.0
    %196 = vmatpush1.msra.mxu0 %v161
    %197 = vmatprep.subr.mxu0 0.0
    %198 = vmatpush1.msra.mxu0 %v160
    %199 = vmatprep.subr.mxu0 0.0
    %200 = vmatpush1.msra.mxu0 %v159
    %201 = vmatprep.subr.mxu0 0.0
    %202 = vmatpush1.msra.mxu0 %v158
    %203 = vmatprep.subr.mxu0 0.0
    %204 = vmatpush1.msra.mxu0 %v157
    %205 = vmatprep.subr.mxu0 0.0
    %206 = vmatpush2.msra.mxu0 0.0
    %207 = vmatprep.subr.mxu0 0.0
    %208 = vmatpush2.msra.mxu0 0.0
    %209 = vmatprep.subr.mxu0 0.0
    %210 = vmatpush2.msra.mxu0 0.0
    %211 = vmatprep.subr.mxu0 0.0
    %212 = vmatpush2.msra.mxu0 0.0
    %213 = vmatprep.subr.mxu0 0.0
    %214 = vmatpush2.msra.mxu0 0.0
    %215 = vmatprep.subr.mxu0 0.0
    %216 = vmatpush2.msra.mxu0 0.0
    %217 = vmatprep.subr.mxu0 0.0
    %218 = vmatpush2.msra.mxu0 0.0
    %219 = vmatprep.subr.mxu0 0.0
    %220 = vmatpush2.msra.mxu0 0.0
    %221 = vmatprep.subr.mxu0 0.0
    %222 = vmatpush2.msra.mxu0 0.0
    %223 = vmatprep.subr.mxu0 0.0
    %224 = vmatpush2.msra.mxu0 0.0
    %225 = vmatprep.subr.mxu0 0.0
    %226 = vmatpush2.msra.mxu0 0.0
    %227 = vmatprep.subr.mxu0 0.0
    %228 = vmatpush2.msra.mxu0 0.0
    %229 = vmatprep.subr.mxu0 0.0
    %230 = vmatpush2.msra.mxu0 0.0
    %231 = vmatprep.subr.mxu0 0.0
    %232 = vmatpush2.msra.mxu0 0.0
    %233 = vmatprep.subr.mxu0 0.0
    %234 = vmatpush2.msra.mxu0 0.0
    %235 = vmatprep.subr.mxu0 0.0
    %236 = vmatpush2.msra.mxu0 0.0
    %237 = vmatprep.mubr.f32.mxu0 0.0
    %238 = vmatmul.mubr.f32.gmra.mxu0 %v151
    %v239 = vpop.f32.mrf.mxu0
    %v240 = vadd.f32 0.0, %v239
    %v241 = vpop.f32.mrf.mxu0
    %242 = vmatprep.mubr.f32.mxu0 0.0
    %243 = vmatmul.mubr.f32.gmra.mxu0 %v154
    %v244 = vpop.f32.mrf.mxu0
    %v245 = vadd.f32 0.0, %v244
    %v246 = vpop.f32.mrf.mxu0
    %247 = vdwg.mxu0
    %vm248 = vcmask 31744
    %v249 = vsel %vm248, %v240, -inf
    %v250 = vrot.slane %v249, 4
    %v251 = vmax.f32 %v249, %v250
    %v252 = vrot.slane %v251, 2
    %v253 = vmax.f32 %v251, %v252
    %v254 = vrot.slane %v253, 1
    %v255 = vmax.f32 %v253, %v254
    %v256 = vsel %vm248, %v245, -inf
    %v257 = vrot.slane %v256, 4
    %v258 = vmax.f32 %v256, %v257
    %v259 = vrot.slane %v258, 2
    %v260 = vmax.f32 %v258, %v259
    %v261 = vrot.slane %v260, 1
    %v262 = vmax.f32 %v260, %v261
    %v263 = vsub.f32 %v240, %v255
    %v264 = vsub.f32 %v245, %v262
    %v265 = vmul.f32 %v263, 1.442695
    %v266 = vpow.pop %v265
    %v267 = vmul.f32 %v264, 1.442695
    %v268 = vpow.pop %v267
    %v269 = vsel %vm248, %v266, 0.0
    %v270 = vrot.slane %v269, 4
    %v271 = vadd.f32 %v269, %v270
    %v272 = vrot.slane %v271, 2
    %v273 = vadd.f32 %v271, %v272
    %v274 = vrot.slane %v273, 1
    %v275 = vadd.f32 %v273, %v274
    %v276 = vsel %vm248, %v268, 0.0
    %v277 = vrot.slane %v276, 4
    %v278 = vadd.f32 %v276, %v277
    %v279 = vrot.slane %v278, 2
    %v280 = vadd.f32 %v278, %v279
    %v281 = vrot.slane %v280, 1
    %v282 = vadd.f32 %v280, %v281
    %v283 = vrcp.pop %v275
    %v284 = vrcp.pop %v282
    %v285 = vmul.f32 %v266, %v283
    %v286 = vmul.f32 %v268, %v284
    %v287 = vld [vmem:[%s6] sm:$0xf]
    %v289 = vsel %vm248, %v285, 0
    %v292 = vsel %vm248, %v286, 0
    %vm294 = vcmask 1043456
    %v296 = vsel %vm294, %v287, 0
    %298 = vmatprep.subr.mxu0 0.0
    %299 = vmatpush1.msra.mxu0 0.0
    %300 = vmatprep.subr.mxu0 0.0
    %301 = vmatpush1.msra.mxu0 0.0
    %302 = vmatprep.subr.mxu0 0.0
    %303 = vmatpush1.msra.mxu0 0.0
    %304 = vmatprep.subr.mxu0 0.0
    %305 = vmatpush1.msra.mxu0 0.0
    %306 = vmatprep.subr.mxu0 0.0
    %307 = vmatpush1.msra.mxu0 0.0
    %308 = vmatprep.subr.mxu0 0.0
    %309 = vmatpush1.msra.mxu0 0.0
    %310 = vmatprep.subr.mxu0 0.0
    %311 = vmatpush1.msra.mxu0 0.0
    %312 = vmatprep.subr.mxu0 0.0
    %313 = vmatpush1.msra.mxu0 0.0
    %314 = vmatprep.subr.mxu0 0.0
    %315 = vmatpush1.msra.mxu0 0.0
    %316 = vmatprep.subr.mxu0 0.0
    %317 = vmatpush1.msra.mxu0 0.0
    %318 = vmatprep.subr.mxu0 0.0
    %319 = vmatpush1.msra.mxu0 0.0
    %320 = vmatprep.subr.mxu0 0.0
    %321 = vmatpush1.msra.mxu0 0.0
    %322 = vmatprep.subr.mxu0 0.0
    %323 = vmatpush1.msra.mxu0 0.0
    %324 = vmatprep.subr.mxu0 0.0
    %325 = vmatpush1.msra.mxu0 0.0
    %326 = vmatprep.subr.mxu0 0.0
    %327 = vmatpush1.msra.mxu0 0.0
    %328 = vmatprep.subr.mxu0 0.0
    %329 = vmatpush1.msra.mxu0 %v296
    %330 = vmatprep.subr.mxu0 0.0
    %331 = vmatpush2.msra.mxu0 0.0
    %332 = vmatprep.subr.mxu0 0.0
    %333 = vmatpush2.msra.mxu0 0.0
    %334 = vmatprep.subr.mxu0 0.0
    %335 = vmatpush2.msra.mxu0 0.0
    %336 = vmatprep.subr.mxu0 0.0
    %337 = vmatpush2.msra.mxu0 0.0
    %338 = vmatprep.subr.mxu0 0.0
    %339 = vmatpush2.msra.mxu0 0.0
    %340 = vmatprep.subr.mxu0 0.0
    %341 = vmatpush2.msra.mxu0 0.0
    %342 = vmatprep.subr.mxu0 0.0
    %343 = vmatpush2.msra.mxu0 0.0
    %344 = vmatprep.subr.mxu0 0.0
    %345 = vmatpush2.msra.mxu0 0.0
    %346 = vmatprep.subr.mxu0 0.0
    %347 = vmatpush2.msra.mxu0 0.0
    %348 = vmatprep.subr.mxu0 0.0
    %349 = vmatpush2.msra.mxu0 0.0
    %350 = vmatprep.subr.mxu0 0.0
    %351 = vmatpush2.msra.mxu0 0.0
    %352 = vmatprep.subr.mxu0 0.0
    %353 = vmatpush2.msra.mxu0 0.0
    %354 = vmatprep.subr.mxu0 0.0
    %355 = vmatpush2.msra.mxu0 0.0
    %356 = vmatprep.subr.mxu0 0.0
    %357 = vmatpush2.msra.mxu0 0.0
    %358 = vmatprep.subr.mxu0 0.0
    %359 = vmatpush2.msra.mxu0 0.0
    %360 = vmatprep.subr.mxu0 0.0
    %361 = vmatpush2.msra.mxu0 0.0
    %362 = vmatprep.mubr.f32.mxu0 0.0
    %363 = vmatmul.mubr.f32.gmra.mxu0 %v289
    %v364 = vpop.f32.mrf.mxu0
    %v365 = vadd.f32 0.0, %v364
    %v366 = vpop.f32.mrf.mxu0
    %367 = vmatprep.mubr.f32.mxu0 0.0
    %368 = vmatmul.mubr.f32.gmra.mxu0 %v292
    %v369 = vpop.f32.mrf.mxu0
    %v370 = vadd.f32 0.0, %v369
    %v371 = vpop.f32.mrf.mxu0
    %372 = vdwg.mxu0
    %v373 = vmul.f32 %v365, %v151
    %v374 = vmul.f32 %v370, %v154
    %v375 = vrot.slane %v373, 4
    %v376 = vadd.f32 %v373, %v375
    %v377 = vrot.slane %v376, 2
    %v378 = vadd.f32 %v376, %v377
    %v379 = vrot.slane %v378, 1
    %v380 = vadd.f32 %v378, %v379
    %v381 = vrot.slane %v374, 4
    %v382 = vadd.f32 %v374, %v381
    %v383 = vrot.slane %v382, 2
    %v384 = vadd.f32 %v382, %v383
    %v385 = vrot.slane %v384, 1
    %v386 = vadd.f32 %v384, %v385
    %v387 = vmul.f32 %v380, %v151
    %v388 = vmul.f32 %v386, %v154
    %v389 = vpack.c.bf16 %v388, %v387
    %v390 = vld [vmem:[%s3] sm:$0xf]
    %v391 = vld [vmem:[%s3 + $0x4] sm:$0xf]
    %v392 = vld [vmem:[%s3 + $0x8] sm:$0xf]
    %v393 = vld [vmem:[%s3 + $0xc] sm:$0xf]
    %v394 = vld [vmem:[%s3 + $0x10] sm:$0xf]
    %v395 = vld [vmem:[%s3 + $0x14] sm:$0xf]
    %v396 = vld [vmem:[%s3 + $0x18] sm:$0xf]
    %v397 = vld [vmem:[%s3 + $0x1c] sm:$0xf]
    %v398 = vld [vmem:[%s3 + $0x20] sm:$0xf]
    %v399 = vld [vmem:[%s3 + $0x24] sm:$0xf]
    %v400 = vld [vmem:[%s3 + $0x28] sm:$0xf]
    %v401 = vld [vmem:[%s3 + $0x2c] sm:$0xf]
    %v402 = vld [vmem:[%s3 + $0x30] sm:$0xf]
    %v403 = vld [vmem:[%s3 + $0x34] sm:$0xf]
    %v404 = vld [vmem:[%s3 + $0x38] sm:$0xf]
    %v405 = vld [vmem:[%s3 + $0x3c] sm:$0xf]
    %v406 = vld [vmem:[%s4] sm:$0x1]
    %v408 = vlaneseq
    %v409 = vshrl.u32 %v408, 7
    %v410 = vsub.s32 0, %v409
    %v411 = vrot.slane %v406, %v410
    %v429 = vunpack.c.l.b16 %v390
    %v430 = vunpack.c.l.b16 %v391
    %v431 = vunpack.c.l.b16 %v392
    %v432 = vunpack.c.l.b16 %v393
    %v433 = vunpack.c.l.b16 %v394
    %v434 = vunpack.c.l.b16 %v395
    %v435 = vunpack.c.l.b16 %v396
    %v436 = vunpack.c.l.b16 %v397
    %v437 = vunpack.c.l.b16 %v398
    %v438 = vunpack.c.l.b16 %v399
    %v439 = vunpack.c.l.b16 %v400
    %v440 = vunpack.c.l.b16 %v401
    %v441 = vunpack.c.l.b16 %v402
    %v442 = vunpack.c.l.b16 %v403
    %v443 = vunpack.c.l.b16 %v404
    %v444 = vunpack.c.l.b16 %v405
    %v445 = vpack.c.b16 %v430, %v429
    %v446 = vpack.c.b16 %v432, %v431
    %v447 = vpack.c.b16 %v434, %v433
    %v448 = vpack.c.b16 %v436, %v435
    %v449 = vpack.c.b16 %v438, %v437
    %v450 = vpack.c.b16 %v440, %v439
    %v451 = vpack.c.b16 %v442, %v441
    %v452 = vpack.c.b16 %v444, %v443
    %461 = vmatprep.subr.bf16.mxu0 0
    %462 = vmatpush1.bf16.msra.mxu0 %v452
    %463 = vmatprep.subr.bf16.mxu0 0
    %464 = vmatpush1.bf16.msra.mxu0 %v451
    %465 = vmatprep.subr.bf16.mxu0 0
    %466 = vmatpush1.bf16.msra.mxu0 %v450
    %467 = vmatprep.subr.bf16.mxu0 0
    %468 = vmatpush1.bf16.msra.mxu0 %v449
    %469 = vmatprep.subr.bf16.mxu0 0
    %470 = vmatpush1.bf16.msra.mxu0 %v448
    %471 = vmatprep.subr.bf16.mxu0 0
    %472 = vmatpush1.bf16.msra.mxu0 %v447
    %473 = vmatprep.subr.bf16.mxu0 0
    %474 = vmatpush1.bf16.msra.mxu0 %v446
    %475 = vmatprep.subr.bf16.mxu0 0
    %476 = vmatpush1.bf16.msra.mxu0 %v445
    %477 = vmatprep.subr.bf16.mxu0 0
    %478 = vmatpush2.bf16.msra.mxu0 0
    %479 = vmatprep.subr.bf16.mxu0 0
    %480 = vmatpush2.bf16.msra.mxu0 0
    %481 = vmatprep.subr.bf16.mxu0 0
    %482 = vmatpush2.bf16.msra.mxu0 0
    %483 = vmatprep.subr.bf16.mxu0 0
    %484 = vmatpush2.bf16.msra.mxu0 0
    %485 = vmatprep.subr.bf16.mxu0 0
    %486 = vmatpush2.bf16.msra.mxu0 0
    %487 = vmatprep.subr.bf16.mxu0 0
    %488 = vmatpush2.bf16.msra.mxu0 0
    %489 = vmatprep.subr.bf16.mxu0 0
    %490 = vmatpush2.bf16.msra.mxu0 0
    %491 = vmatprep.subr.bf16.mxu0 0
    %492 = vmatpush2.bf16.msra.mxu0 0
    %493 = vmatprep.mubr.bf16.mxu0 0
    %494 = vmatmul.mubr.bf16.gmra.mxu0 %v389
    %v495 = vpop.f32.mrf.mxu0
    %v496 = vadd.f32 %v411, %v495
    %v497 = vpop.f32.mrf.mxu0
    %v498 = vpop.f32.mrf.mxu0
    %v499 = vadd.f32 %v411, %v498
    %v500 = vpop.f32.mrf.mxu0
    %501 = vdwg.mxu0
    %v502 = vadd.f32 %v151, %v496
    %v503 = vadd.f32 %v154, %v499
    %504 = vst [vmem:[#allocation5] sm:$0xff] %v502
    %505 = vst [vmem:[#allocation5 + $0x8] sm:$0xff] %v503
    // Predicated region
    $region34: #{tpu_custom_call.1} parent=1 // pred_check
      _
    $region35: #{tpu_custom_call.1} parent=1 // pred_check_branch
      %507 = sbr.rel (0) target = $region37
    $region36: #{tpu_custom_call.1} parent=1 // pred_region
      %s509 = ssub.s32 256, 256
      %510 = vsyncadd [#allocation4], %s509
      %s511 = sshll.u32 [#allocation5], 4
      %s512 = int_to_ptr.vmem [resolvable:$true] %s511
      %517 = dma.vmem_to_hbm [thread:$0]  %s512, 256, %s7, [#allocation4], 128, 128, 8
    $region37: #{tpu_custom_call.1} parent=1 // pred_fallthru
      _
    // Predicated region
    $region38: #{tpu_custom_call.1} parent=1 // pred_check
      _
    $region39: #{tpu_custom_call.1} parent=1 // pred_check_branch
      %519 = sbr.rel (0) target = $region41
    $region40: #{tpu_custom_call.1} parent=1 // pred_region
      %520 = dma.done [#allocation4], 256
    $region41: #{tpu_custom_call.1} parent=1 // pred_fallthru
      _
    %521 = vsyncpa [#allocation3], 1
    %522 = vsyncpa [#allocation4], 1

</llo_original>
